<compile_context>
chip_gen: v7x
topology: tpu7x:2x2x1
jax: 0.10.0
libtpu: 0.0.40
codegen_flags: <defaults>
</compile_context>

<pallas_src>
import functools

import jax
import jax.numpy as jnp
from jax.experimental import pallas as pl
from jax.experimental.pallas import tpu as pltpu


Z_DIM = 64
Z_PAD = 128            # latent dim padded to a full lane tile
H1 = 128
H2 = 256
IMG_DIM = 28 * 28      # 784 (flattened MNIST image)
IMG_PAD = 896          # 7 * 128, lane-dense output width


def _leaky_relu(x, slope=0.1):
    return jnp.where(x > 0, x, slope * x)


def generator_kernel(x_ref, w1_ref, b1_ref, w2_ref, b2_ref, w3_ref, b3_ref, o_ref):
    """Fused 3-layer MLP generator forward pass (one batch tile per grid step)."""
    # bf16 inputs to the MXU, f32 accumulation / elementwise math.
    x = x_ref[...].astype(jnp.bfloat16)                       # [tb, Z_PAD]

    # Layer 1: Linear(z -> 128) + LeakyReLU(0.1)
    h1 = jnp.dot(x, w1_ref[...], preferred_element_type=jnp.float32) + b1_ref[...]
    h1 = _leaky_relu(h1)

    # Layer 2: Linear(128 -> 256) + LeakyReLU(0.1)
    h2 = jnp.dot(h1.astype(jnp.bfloat16), w2_ref[...],
                 preferred_element_type=jnp.float32) + b2_ref[...]
    h2 = _leaky_relu(h2)

    # Layer 3: Linear(256 -> IMG_PAD) + Tanh   (padded cols are zero -> tanh(0)=0)
    h3 = jnp.dot(h2.astype(jnp.bfloat16), w3_ref[...],
                 preferred_element_type=jnp.float32) + b3_ref[...]
    o_ref[...] = jnp.tanh(h3).astype(o_ref.dtype)


@functools.partial(jax.jit, static_argnames=("batch_tile",))
def generator_forward(x, params, batch_tile=128):
    """Pallas generator forward.

    x      : [batch, Z_DIM] float32 latent noise
    params : dict (see init_params): bf16 weights (z padded to 128, img padded
             to 896), f32 biases.
    Returns [batch, IMG_DIM] float32.
    """
    batch, zdim = x.shape

    # Pad latent dim to a full lane tile (extra w1 rows are zero).
    if zdim < Z_PAD:
        x = jnp.pad(x, ((0, 0), (0, Z_PAD - zdim)))

    # Pick a batch tile: up to `batch_tile` rows, always a multiple of 8 sublanes.
    tb = min(batch_tile, ((batch + 7) // 8) * 8)
    b_pad = pl.cdiv(batch, tb) * tb
    if b_pad != batch:
        x = jnp.pad(x, ((0, b_pad - batch), (0, 0)))

    grid = (b_pad // tb,)

    # Weights/biases: same block every grid step -> DMA'd once, VMEM-resident.
    resident = lambda shape: pl.BlockSpec(shape, lambda i: (0,) * len(shape))

    out = pl.pallas_call(
        generator_kernel,
        out_shape=jax.ShapeDtypeStruct((b_pad, IMG_PAD), jnp.float32),
        grid=grid,
        in_specs=[
            pl.BlockSpec((tb, Z_PAD), lambda i: (i, 0)),        # x tile
            resident(params["w1"].shape),
            resident(params["b1"].shape),
            resident(params["w2"].shape),
            resident(params["b2"].shape),
            resident(params["w3"].shape),
            resident(params["b3"].shape),
        ],
        out_specs=pl.BlockSpec((tb, IMG_PAD), lambda i: (i, 0)),
        compiler_params=pltpu.CompilerParams(
            dimension_semantics=("parallel",)),
    )(x, params["w1"], params["b1"], params["w2"], params["b2"],
      params["w3"], params["b3"])

    return out[:batch, :IMG_DIM]


def init_params(key):
    """nn.Linear-style uniform(-1/sqrt(fan_in), 1/sqrt(fan_in)) init.

    Weights are stored transposed vs. PyTorch ([in, out]), cast to bf16, and
    padded: w1 rows 64..127 are zero, w3/b3 columns 784..895 are zero.
    """
    ks = jax.random.split(key, 6)

    def linear(kw, kb, fan_in, fan_out):
        bound = 1.0 / jnp.sqrt(jnp.float32(fan_in))
        w = jax.random.uniform(kw, (fan_in, fan_out), jnp.float32, -bound, bound)
        b = jax.random.uniform(kb, (1, fan_out), jnp.float32, -bound, bound)
        return w, b

    w1, b1 = linear(ks[0], ks[1], Z_DIM, H1)
    w2, b2 = linear(ks[2], ks[3], H1, H2)
    w3, b3 = linear(ks[4], ks[5], H2, IMG_DIM)

    # Pad: zero latent rows for w1, zero output columns for w3/b3.
    w1 = jnp.pad(w1, ((0, Z_PAD - Z_DIM), (0, 0)))
    w3 = jnp.pad(w3, ((0, 0), (0, IMG_PAD - IMG_DIM)))
    b3 = jnp.pad(b3, ((0, 0), (0, IMG_PAD - IMG_DIM)))

    return {
        "w1": w1.astype(jnp.bfloat16), "b1": b1,
        "w2": w2.astype(jnp.bfloat16), "b2": b2,
        "w3": w3.astype(jnp.bfloat16), "b3": b3,
    }


def generator_reference(x, p):
    """Plain-JAX reference mirroring the kernel numerics (bf16 dot inputs, f32 acc)."""
    x = jnp.pad(x, ((0, 0), (0, Z_PAD - x.shape[1])))

    def dot(a, w):
        return jnp.dot(a.astype(jnp.bfloat16), w, preferred_element_type=jnp.float32)

    h = _leaky_relu(dot(x, p["w1"]) + p["b1"])
    h = _leaky_relu(dot(h, p["w2"]) + p["b2"])
    h = jnp.tanh(dot(h, p["w3"]) + p["b3"])
    return h[:, :IMG_DIM]


if __name__ == "__main__":
    key = jax.random.PRNGKey(0)
    k_params, k_x = jax.random.split(key)

    batch = 8
    params = init_params(k_params)
    x = jax.random.normal(k_x, (batch, Z_DIM), jnp.float32)  # latent noise z

    out = generator_forward(x, params)
    out = jax.block_until_ready(out)

    ref = generator_reference(x, params)
    assert out.shape == (batch, IMG_DIM), out.shape
    max_err = float(jnp.max(jnp.abs(out - ref)))
    assert jnp.allclose(out, ref, atol=2e-2, rtol=2e-2), max_err

    print("KERNEL_OK")
</pallas_src>

<mosaic_0001>
module attributes {stable_mosaic.version = 11 : i64} {
  func.func @generator_kernel(%arg0: i32, %arg1: memref<8x128xf32, #tpu.memory_space<vmem>>, %arg2: memref<128x128xbf16, #tpu.memory_space<vmem>>, %arg3: memref<1x128xf32, #tpu.memory_space<vmem>>, %arg4: memref<128x256xbf16, #tpu.memory_space<vmem>>, %arg5: memref<1x256xf32, #tpu.memory_space<vmem>>, %arg6: memref<256x896xbf16, #tpu.memory_space<vmem>>, %arg7: memref<1x896xf32, #tpu.memory_space<vmem>>, %arg8: memref<8x896xf32, #tpu.memory_space<vmem>>) attributes {dimension_semantics = [#tpu.dimension_semantics<parallel>], iteration_bounds = array<i64: 1>, scalar_prefetch = 0 : i64, scratch_operands = 0 : i64, tpu.core_type = #tpu.core_type<tc>, window_params = [{transform_indices = @transform_0, window_bounds = array<i64: 8, 128>}, {pipeline_mode = #tpu.pipeline_mode<synchronous>, transform_indices = @transform_1, window_bounds = array<i64: 128, 128>}, {pipeline_mode = #tpu.pipeline_mode<synchronous>, transform_indices = @transform_2, window_bounds = array<i64: 1, 128>}, {pipeline_mode = #tpu.pipeline_mode<synchronous>, transform_indices = @transform_3, window_bounds = array<i64: 128, 256>}, {pipeline_mode = #tpu.pipeline_mode<synchronous>, transform_indices = @transform_4, window_bounds = array<i64: 1, 256>}, {pipeline_mode = #tpu.pipeline_mode<synchronous>, transform_indices = @transform_5, window_bounds = array<i64: 256, 896>}, {pipeline_mode = #tpu.pipeline_mode<synchronous>, transform_indices = @transform_6, window_bounds = array<i64: 1, 896>}, {transform_indices = @transform_7, window_bounds = array<i64: 8, 896>}]} {
    %c0 = arith.constant 0 : index
    %c0_0 = arith.constant 0 : index
    %0 = vector.load %arg1[%c0, %c0_0] : memref<8x128xf32, #tpu.memory_space<vmem>>, vector<8x128xf32>
    %1 = arith.truncf %0 : vector<8x128xf32> to vector<8x128xbf16>
    %c0_1 = arith.constant 0 : index
    %c0_2 = arith.constant 0 : index
    %2 = vector.load %arg2[%c0_1, %c0_2] : memref<128x128xbf16, #tpu.memory_space<vmem>>, vector<128x128xbf16>
    %cst = arith.constant dense<0.000000e+00> : vector<8x128xf32>
    %3 = tpu.matmul %1, %2, %cst {dimension_numbers = #tpu.dot_dimension_numbers<[1], [0], [0], [1], [0, 0, 1, 1], [], []>} : vector<8x128xbf16>, vector<128x128xbf16>, vector<8x128xf32> -> vector<8x128xf32>
    %c0_3 = arith.constant 0 : index
    %c0_4 = arith.constant 0 : index
    %4 = vector.load %arg3[%c0_3, %c0_4] : memref<1x128xf32, #tpu.memory_space<vmem>>, vector<1x128xf32>
    %5 = vector.broadcast %4 : vector<1x128xf32> to vector<8x128xf32>
    %6 = arith.addf %3, %5 : vector<8x128xf32>
    %cst_5 = arith.constant 0.000000e+00 : f32
    %7 = vector.broadcast %cst_5 : f32 to vector<8x128xf32>
    %8 = arith.cmpf ogt, %6, %7 : vector<8x128xf32>
    %cst_6 = arith.constant 1.000000e-01 : f32
    %9 = vector.broadcast %cst_6 : f32 to vector<8x128xf32>
    %10 = arith.mulf %9, %6 : vector<8x128xf32>
    %11 = arith.select %8, %6, %10 : vector<8x128xi1>, vector<8x128xf32>
    %12 = arith.truncf %11 : vector<8x128xf32> to vector<8x128xbf16>
    %c0_7 = arith.constant 0 : index
    %c0_8 = arith.constant 0 : index
    %13 = vector.load %arg4[%c0_7, %c0_8] : memref<128x256xbf16, #tpu.memory_space<vmem>>, vector<128x256xbf16>
    %cst_9 = arith.constant dense<0.000000e+00> : vector<8x256xf32>
    %14 = tpu.matmul %12, %13, %cst_9 {dimension_numbers = #tpu.dot_dimension_numbers<[1], [0], [0], [1], [0, 0, 1, 1], [], []>} : vector<8x128xbf16>, vector<128x256xbf16>, vector<8x256xf32> -> vector<8x256xf32>
    %c0_10 = arith.constant 0 : index
    %c0_11 = arith.constant 0 : index
    %15 = vector.load %arg5[%c0_10, %c0_11] : memref<1x256xf32, #tpu.memory_space<vmem>>, vector<1x256xf32>
    %16 = vector.broadcast %15 : vector<1x256xf32> to vector<8x256xf32>
    %17 = arith.addf %14, %16 : vector<8x256xf32>
    %cst_12 = arith.constant 0.000000e+00 : f32
    %18 = vector.broadcast %cst_12 : f32 to vector<8x256xf32>
    %19 = arith.cmpf ogt, %17, %18 : vector<8x256xf32>
    %cst_13 = arith.constant 1.000000e-01 : f32
    %20 = vector.broadcast %cst_13 : f32 to vector<8x256xf32>
    %21 = arith.mulf %20, %17 : vector<8x256xf32>
    %22 = arith.select %19, %17, %21 : vector<8x256xi1>, vector<8x256xf32>
    %23 = arith.truncf %22 : vector<8x256xf32> to vector<8x256xbf16>
    %c0_14 = arith.constant 0 : index
    %c0_15 = arith.constant 0 : index
    %24 = vector.load %arg6[%c0_14, %c0_15] : memref<256x896xbf16, #tpu.memory_space<vmem>>, vector<256x896xbf16>
    %cst_16 = arith.constant dense<0.000000e+00> : vector<8x896xf32>
    %25 = tpu.matmul %23, %24, %cst_16 {dimension_numbers = #tpu.dot_dimension_numbers<[1], [0], [0], [1], [0, 0, 1, 1], [], []>} : vector<8x256xbf16>, vector<256x896xbf16>, vector<8x896xf32> -> vector<8x896xf32>
    %c0_17 = arith.constant 0 : index
    %c0_18 = arith.constant 0 : index
    %26 = vector.load %arg7[%c0_17, %c0_18] : memref<1x896xf32, #tpu.memory_space<vmem>>, vector<1x896xf32>
    %27 = vector.broadcast %26 : vector<1x896xf32> to vector<8x896xf32>
    %28 = arith.addf %25, %27 : vector<8x896xf32>
    %29 = math.tanh %28 : vector<8x896xf32>
    %c0_19 = arith.constant 0 : index
    %c0_20 = arith.constant 0 : index
    %30 = vector.load %arg8[%c0_19, %c0_20] : memref<8x896xf32, #tpu.memory_space<vmem>>, vector<8x896xf32>
    tpu.vector_store %arg8[%c0_19, %c0_20], %29 {strides = array<i32>} : memref<8x896xf32, #tpu.memory_space<vmem>>, vector<8x896xf32>,
    return
  }
  func.func @transform_0(%arg0: i32) -> (i32, i32) {
    %c0_i32 = arith.constant 0 : i32
    %c0_i32_0 = arith.constant 0 : i32
    return %arg0, %c0_i32 : i32, i32
  }
  func.func @transform_1(%arg0: i32) -> (i32, i32) {
    %c0_i32 = arith.constant 0 : i32
    %c0_i32_0 = arith.constant 0 : i32
    %c0_i32_1 = arith.constant 0 : i32
    return %c0_i32, %c0_i32_0 : i32, i32
  }
  func.func @transform_2(%arg0: i32) -> (i32, i32) {
    %c0_i32 = arith.constant 0 : i32
    %c0_i32_0 = arith.constant 0 : i32
    %c0_i32_1 = arith.constant 0 : i32
    return %c0_i32, %c0_i32_0 : i32, i32
  }
  func.func @transform_3(%arg0: i32) -> (i32, i32) {
    %c0_i32 = arith.constant 0 : i32
    %c0_i32_0 = arith.constant 0 : i32
    %c0_i32_1 = arith.constant 0 : i32
    return %c0_i32, %c0_i32_0 : i32, i32
  }
  func.func @transform_4(%arg0: i32) -> (i32, i32) {
    %c0_i32 = arith.constant 0 : i32
    %c0_i32_0 = arith.constant 0 : i32
    %c0_i32_1 = arith.constant 0 : i32
    return %c0_i32, %c0_i32_0 : i32, i32
  }
  func.func @transform_5(%arg0: i32) -> (i32, i32) {
    %c0_i32 = arith.constant 0 : i32
    %c0_i32_0 = arith.constant 0 : i32
    %c0_i32_1 = arith.constant 0 : i32
    return %c0_i32, %c0_i32_0 : i32, i32
  }
  func.func @transform_6(%arg0: i32) -> (i32, i32) {
    %c0_i32 = arith.constant 0 : i32
    %c0_i32_0 = arith.constant 0 : i32
    %c0_i32_1 = arith.constant 0 : i32
    return %c0_i32, %c0_i32_0 : i32, i32
  }
  func.func @transform_7(%arg0: i32) -> (i32, i32) {
    %c0_i32 = arith.constant 0 : i32
    %c0_i32_0 = arith.constant 0 : i32
    return %arg0, %c0_i32 : i32, i32
  }
}

</mosaic_0001>

<llo_original>
// kernel: generator_forward.1
$region0: #{generator_forward.1}
  #allocation0 [shape = 'u32[]', space=smem, size = 0x4, offset = 0x4, fixed_abs, tag = 'smem constant byte address 0x4 - core index']
  #allocation1 [shape = 'u32[144,128]{1,0:T(1,128)}', space=vmem, size = 0x12000, scoped, tag = 'internal scratch']
  %s0 = inlined_call_operand.vmem [shape: f32[8,128], index: 0, kind: input, shape index: {}]
  %s1 = inlined_call_operand.hbm [shape: bf16[128,128], index: 1, kind: input, shape index: {}]
  %s2 = inlined_call_operand.vmem [shape: f32[1,128], index: 2, kind: input, shape index: {}]
  %s3 = inlined_call_operand.hbm [shape: bf16[128,256], index: 3, kind: input, shape index: {}]
  %s4 = inlined_call_operand.vmem [shape: f32[1,256], index: 4, kind: input, shape index: {}]
  %s5 = inlined_call_operand.hbm [shape: bf16[256,896], index: 5, kind: input, shape index: {}]
  %s6 = inlined_call_operand.vmem [shape: f32[1,896], index: 6, kind: input, shape index: {}]
  %s7 = inlined_call_operand.hbm [shape: f32[8,896], index: 7, kind: output, shape index: {}]
  %s8 = sld [smem:[#allocation0]]
  $region50: #{generator_forward.1} parent=0
    _
  %s10 = ssub.s32 1, %s8
  %s11 = scalar_select 0, %s10, %s8
  $region1: #{generator_forward.1} parent=0
    #allocation2 [shape = 'u8[32768]{0}', space=vmem, size = 0x8000, scoped, tag = 'input window, operand 1, single buffered']
    #allocation3 [shape = 's32[1]{0}', space=sflag, size = 0x4, scoped, tag = 'scoped memory for generator_forward.1']
    #allocation4 [shape = 's32[1]{0}', space=sflag, size = 0x4, scoped, tag = 'scoped memory for generator_forward.1']
    #allocation5 [shape = 'u8[65536]{0}', space=vmem, size = 0x10000, scoped, tag = 'input window, operand 3, single buffered']
    #allocation6 [shape = 's32[1]{0}', space=sflag, size = 0x4, scoped, tag = 'scoped memory for generator_forward.1']
    #allocation7 [shape = 'u8[458752]{0}', space=vmem, size = 0x70000, scoped, tag = 'input window, operand 5, single buffered']
    #allocation8 [shape = 'u8[28672]{0}', space=vmem, size = 0x7000, scoped, tag = 'output window, operand 0, single buffered']
    %12 = vsyncpa [#allocation3], 0
    %13 = vsyncpa [#allocation6], 0
    %14 = vsyncpa [#allocation4], 0
    // Predicated region
    $region2: #{generator_forward.1} parent=1 // pred_check
      _
    $region3: #{generator_forward.1} parent=1 // pred_check_branch
      %16 = sbr.rel (0) target = $region5
    $region4: #{generator_forward.1} parent=1 // pred_region
      _
    $region5: #{generator_forward.1} parent=1 // pred_fallthru
      _
    // Predicated region
    $region6: #{generator_forward.1} parent=1 // pred_check
      _
    $region7: #{generator_forward.1} parent=1 // pred_check_branch
      %18 = sbr.rel (0) target = $region9
    $region8: #{generator_forward.1} parent=1 // pred_region
      %s20 = ssub.s32 1024, 1024
      %21 = vsyncadd [#allocation3], %s20
      %s22 = sshll.u32 [#allocation2], 4
      %s23 = int_to_ptr.vmem [resolvable:$true] %s22
      %28 = dma.hbm_to_vmem [thread:$0]  %s1, 1024, %s23, [#allocation3], 64, 64, 4
    $region9: #{generator_forward.1} parent=1 // pred_fallthru
      _
    // Predicated region
    $region10: #{generator_forward.1} parent=1 // pred_check
      _
    $region11: #{generator_forward.1} parent=1 // pred_check_branch
      %30 = sbr.rel (0) target = $region13
    $region12: #{generator_forward.1} parent=1 // pred_region
      _
    $region13: #{generator_forward.1} parent=1 // pred_fallthru
      _
    // Predicated region
    $region14: #{generator_forward.1} parent=1 // pred_check
      _
    $region15: #{generator_forward.1} parent=1 // pred_check_branch
      %32 = sbr.rel (0) target = $region17
    $region16: #{generator_forward.1} parent=1 // pred_region
      %s34 = ssub.s32 2048, 2048
      %35 = vsyncadd [#allocation6], %s34
      %s36 = sshll.u32 [#allocation5], 4
      %s37 = int_to_ptr.vmem [resolvable:$true] %s36
      %42 = dma.hbm_to_vmem [thread:$0]  %s3, 2048, %s37, [#allocation6], 128, 128, 8
    $region17: #{generator_forward.1} parent=1 // pred_fallthru
      _
    // Predicated region
    $region18: #{generator_forward.1} parent=1 // pred_check
      _
    $region19: #{generator_forward.1} parent=1 // pred_check_branch
      %44 = sbr.rel (0) target = $region21
    $region20: #{generator_forward.1} parent=1 // pred_region
      _
    $region21: #{generator_forward.1} parent=1 // pred_fallthru
      _
    // Predicated region
    $region22: #{generator_forward.1} parent=1 // pred_check
      _
    $region23: #{generator_forward.1} parent=1 // pred_check_branch
      %46 = sbr.rel (0) target = $region25
    $region24: #{generator_forward.1} parent=1 // pred_region
      %s48 = ssub.s32 14336, 14336
      %49 = vsyncadd [#allocation6], %s48
      %s50 = sshll.u32 [#allocation7], 4
      %s51 = int_to_ptr.vmem [resolvable:$true] %s50
      %56 = dma.hbm_to_vmem [thread:$0]  %s5, 14336, %s51, [#allocation6], 448, 448, 28
    $region25: #{generator_forward.1} parent=1 // pred_fallthru
      _
    // Predicated region
    $region26: #{generator_forward.1} parent=1 // pred_check
      _
    $region27: #{generator_forward.1} parent=1 // pred_check_branch
      %58 = sbr.rel (0) target = $region29
    $region28: #{generator_forward.1} parent=1 // pred_region
      _
    $region29: #{generator_forward.1} parent=1 // pred_fallthru
      _
    // Predicated region
    $region30: #{generator_forward.1} parent=1 // pred_check
      _
    $region31: #{generator_forward.1} parent=1 // pred_check_branch
      %60 = sbr.rel (0) target = $region33
    $region32: #{generator_forward.1} parent=1 // pred_region
      %61 = dma.done [#allocation3], 1024
    $region33: #{generator_forward.1} parent=1 // pred_fallthru
      _
    // Predicated region
    $region34: #{generator_forward.1} parent=1 // pred_check
      _
    $region35: #{generator_forward.1} parent=1 // pred_check_branch
      %63 = sbr.rel (0) target = $region37
    $region36: #{generator_forward.1} parent=1 // pred_region
      %64 = dma.done [#allocation6], 2048
    $region37: #{generator_forward.1} parent=1 // pred_fallthru
      _
    // Predicated region
    $region38: #{generator_forward.1} parent=1 // pred_check
      _
    $region39: #{generator_forward.1} parent=1 // pred_check_branch
      %66 = sbr.rel (0) target = $region41
    $region40: #{generator_forward.1} parent=1 // pred_region
      %67 = dma.done [#allocation6], 14336
    $region41: #{generator_forward.1} parent=1 // pred_fallthru
      _
    %v69 = vld [vmem:[%s0] sm:$0xff]
    %v70 = vpack.c.bf16 %v69, %v69
    %v71 = vld [vmem:[#allocation2] sm:$0xf]
    %v72 = vld [vmem:[#allocation2 + $0x4] sm:$0xf]
    %v73 = vld [vmem:[#allocation2 + $0x8] sm:$0xf]
    %v74 = vld [vmem:[#allocation2 + $0xc] sm:$0xf]
    %v75 = vld [vmem:[#allocation2 + $0x10] sm:$0xf]
    %v76 = vld [vmem:[#allocation2 + $0x14] sm:$0xf]
    %v77 = vld [vmem:[#allocation2 + $0x18] sm:$0xf]
    %v78 = vld [vmem:[#allocation2 + $0x1c] sm:$0xf]
    %v79 = vld [vmem:[#allocation2 + $0x20] sm:$0xf]
    %v80 = vld [vmem:[#allocation2 + $0x24] sm:$0xf]
    %v81 = vld [vmem:[#allocation2 + $0x28] sm:$0xf]
    %v82 = vld [vmem:[#allocation2 + $0x2c] sm:$0xf]
    %v83 = vld [vmem:[#allocation2 + $0x30] sm:$0xf]
    %v84 = vld [vmem:[#allocation2 + $0x34] sm:$0xf]
    %v85 = vld [vmem:[#allocation2 + $0x38] sm:$0xf]
    %v86 = vld [vmem:[#allocation2 + $0x3c] sm:$0xf]
    %v87 = vld [vmem:[%s2] sm:$0x1]
    %v89 = vlaneseq
    %v90 = vshrl.u32 %v89, 7
    %v91 = vsub.s32 0, %v90
    %v92 = vrot.slane %v87, %v91
    %v110 = vunpack.c.l.b16 %v71
    %v111 = vunpack.c.l.b16 %v72
    %v112 = vunpack.c.l.b16 %v73
    %v113 = vunpack.c.l.b16 %v74
    %v114 = vunpack.c.l.b16 %v75
    %v115 = vunpack.c.l.b16 %v76
    %v116 = vunpack.c.l.b16 %v77
    %v117 = vunpack.c.l.b16 %v78
    %v118 = vunpack.c.l.b16 %v79
    %v119 = vunpack.c.l.b16 %v80
    %v120 = vunpack.c.l.b16 %v81
    %v121 = vunpack.c.l.b16 %v82
    %v122 = vunpack.c.l.b16 %v83
    %v123 = vunpack.c.l.b16 %v84
    %v124 = vunpack.c.l.b16 %v85
    %v125 = vunpack.c.l.b16 %v86
    %v126 = vpack.c.b16 %v111, %v110
    %v127 = vpack.c.b16 %v113, %v112
    %v128 = vpack.c.b16 %v115, %v114
    %v129 = vpack.c.b16 %v117, %v116
    %v130 = vpack.c.b16 %v119, %v118
    %v131 = vpack.c.b16 %v121, %v120
    %v132 = vpack.c.b16 %v123, %v122
    %v133 = vpack.c.b16 %v125, %v124
    %142 = vmatprep.subr.bf16.mxu0 0
    %143 = vmatpush1.bf16.msra.mxu0 %v126
    %144 = vmatprep.subr.bf16.mxu0 0
    %145 = vmatpush1.bf16.msra.mxu0 %v127
    %146 = vmatprep.subr.bf16.mxu0 0
    %147 = vmatpush1.bf16.msra.mxu0 %v128
    %148 = vmatprep.subr.bf16.mxu0 0
    %149 = vmatpush1.bf16.msra.mxu0 %v129
    %150 = vmatprep.subr.bf16.mxu0 0
    %151 = vmatpush1.bf16.msra.mxu0 %v130
    %152 = vmatprep.subr.bf16.mxu0 0
    %153 = vmatpush1.bf16.msra.mxu0 %v131
    %154 = vmatprep.subr.bf16.mxu0 0
    %155 = vmatpush1.bf16.msra.mxu0 %v132
    %156 = vmatprep.subr.bf16.mxu0 0
    %157 = vmatpush1.bf16.msra.mxu0 %v133
    %158 = vmatprep.subr.bf16.mxu0 0
    %159 = vmatpush1.bf16.msra.mxu0 0
    %160 = vmatprep.subr.bf16.mxu0 0
    %161 = vmatpush1.bf16.msra.mxu0 0
    %162 = vmatprep.subr.bf16.mxu0 0
    %163 = vmatpush1.bf16.msra.mxu0 0
    %164 = vmatprep.subr.bf16.mxu0 0
    %165 = vmatpush1.bf16.msra.mxu0 0
    %166 = vmatprep.subr.bf16.mxu0 0
    %167 = vmatpush1.bf16.msra.mxu0 0
    %168 = vmatprep.subr.bf16.mxu0 0
    %169 = vmatpush1.bf16.msra.mxu0 0
    %170 = vmatprep.subr.bf16.mxu0 0
    %171 = vmatpush1.bf16.msra.mxu0 0
    %172 = vmatprep.subr.bf16.mxu0 0
    %173 = vmatpush1.bf16.msra.mxu0 0
    %174 = vmatprep.mubr.bf16.mxu0 0
    %175 = vmatmul.mubr.bf16.gmra.mrb[0].mxu0 %v70
    %v176 = vpop.f32.mrb[0].mxu0
    %v177 = vadd.f32 %v92, %v176
    %v178 = vpop.f32.mrb[0].mxu0
    %v179 = vpop.f32.mrb[0].mxu0
    %v180 = vpop.f32.mrb[0].mxu0
    %181 = vdwg.mxu0
    %vm182 = vcmp.gt.f32.partialorder %v177, 0.0
    %v183 = vmul.f32 %v177, 0.1
    %v184 = vsel %vm182, %v177, %v183
    %v185 = vpack.c.bf16 %v184, %v184
    %v186 = vld [vmem:[#allocation5] sm:$0xff]
    %v187 = vld [vmem:[#allocation5 + $0x8] sm:$0xff]
    %v188 = vld [vmem:[#allocation5 + $0x10] sm:$0xff]
    %v189 = vld [vmem:[#allocation5 + $0x18] sm:$0xff]
    %v190 = vld [vmem:[#allocation5 + $0x20] sm:$0xff]
    %v191 = vld [vmem:[#allocation5 + $0x28] sm:$0xff]
    %v192 = vld [vmem:[#allocation5 + $0x30] sm:$0xff]
    %v193 = vld [vmem:[#allocation5 + $0x38] sm:$0xff]
    %v194 = vld [vmem:[#allocation5 + $0x40] sm:$0xff]
    %v195 = vld [vmem:[#allocation5 + $0x48] sm:$0xff]
    %v196 = vld [vmem:[#allocation5 + $0x50] sm:$0xff]
    %v197 = vld [vmem:[#allocation5 + $0x58] sm:$0xff]
    %v198 = vld [vmem:[#allocation5 + $0x60] sm:$0xff]
    %v199 = vld [vmem:[#allocation5 + $0x68] sm:$0xff]
    %v200 = vld [vmem:[#allocation5 + $0x70] sm:$0xff]
    %v201 = vld [vmem:[#allocation5 + $0x78] sm:$0xff]
    %v202 = vld [vmem:[%s4] sm:$0x3]
    %v204 = vlaneseq
    %v205 = vshrl.u32 %v204, 7
    %v206 = vsub.s32 0, %v205
    %v207 = vrot.slane %v202, %v206
    %v208 = vlaneseq
    %v209 = vshrl.u32 %v208, 7
    %v210 = vsub.s32 1, %v209
    %v211 = vrot.slane %v202, %v210
    %v230 = vunpack.c.l.b16 %v186
    %v231 = vunpack.c.h.b16 %v186
    %v232 = vunpack.c.l.b16 %v187
    %v233 = vunpack.c.h.b16 %v187
    %v234 = vunpack.c.l.b16 %v188
    %v235 = vunpack.c.h.b16 %v188
    %v236 = vunpack.c.l.b16 %v189
    %v237 = vunpack.c.h.b16 %v189
    %v238 = vunpack.c.l.b16 %v190
    %v239 = vunpack.c.h.b16 %v190
    %v240 = vunpack.c.l.b16 %v191
    %v241 = vunpack.c.h.b16 %v191
    %v242 = vunpack.c.l.b16 %v192
    %v243 = vunpack.c.h.b16 %v192
    %v244 = vunpack.c.l.b16 %v193
    %v245 = vunpack.c.h.b16 %v193
    %v246 = vunpack.c.l.b16 %v194
    %v247 = vunpack.c.h.b16 %v194
    %v248 = vunpack.c.l.b16 %v195
    %v249 = vunpack.c.h.b16 %v195
    %v250 = vunpack.c.l.b16 %v196
    %v251 = vunpack.c.h.b16 %v196
    %v252 = vunpack.c.l.b16 %v197
    %v253 = vunpack.c.h.b16 %v197
    %v254 = vunpack.c.l.b16 %v198
    %v255 = vunpack.c.h.b16 %v198
    %v256 = vunpack.c.l.b16 %v199
    %v257 = vunpack.c.h.b16 %v199
    %v258 = vunpack.c.l.b16 %v200
    %v259 = vunpack.c.h.b16 %v200
    %v260 = vunpack.c.l.b16 %v201
    %v261 = vunpack.c.h.b16 %v201
    %v262 = vpack.c.b16 %v232, %v230
    %v263 = vpack.c.b16 %v233, %v231
    %v264 = vpack.c.b16 %v236, %v234
    %v265 = vpack.c.b16 %v237, %v235
    %v266 = vpack.c.b16 %v240, %v238
    %v267 = vpack.c.b16 %v241, %v239
    %v268 = vpack.c.b16 %v244, %v242
    %v269 = vpack.c.b16 %v245, %v243
    %v270 = vpack.c.b16 %v248, %v246
    %v271 = vpack.c.b16 %v249, %v247
    %v272 = vpack.c.b16 %v252, %v250
    %v273 = vpack.c.b16 %v253, %v251
    %v274 = vpack.c.b16 %v256, %v254
    %v275 = vpack.c.b16 %v257, %v255
    %v276 = vpack.c.b16 %v260, %v258
    %v277 = vpack.c.b16 %v261, %v259
    %294 = vmatprep.subr.bf16.mxu0 %v263
    %295 = vmatpush1.bf16.msra.mxu0 %v262
    %296 = vmatprep.subr.bf16.mxu0 %v265
    %297 = vmatpush1.bf16.msra.mxu0 %v264
    %298 = vmatprep.subr.bf16.mxu0 %v267
    %299 = vmatpush1.bf16.msra.mxu0 %v266
    %300 = vmatprep.subr.bf16.mxu0 %v269
    %301 = vmatpush1.bf16.msra.mxu0 %v268
    %302 = vmatprep.subr.bf16.mxu0 %v271
    %303 = vmatpush1.bf16.msra.mxu0 %v270
    %304 = vmatprep.subr.bf16.mxu0 %v273
    %305 = vmatpush1.bf16.msra.mxu0 %v272
    %306 = vmatprep.subr.bf16.mxu0 %v275
    %307 = vmatpush1.bf16.msra.mxu0 %v274
    %308 = vmatprep.subr.bf16.mxu0 %v277
    %309 = vmatpush1.bf16.msra.mxu0 %v276
    %310 = vmatprep.subr.bf16.mxu0 0
    %311 = vmatpush1.bf16.msra.mxu0 0
    %312 = vmatprep.subr.bf16.mxu0 0
    %313 = vmatpush1.bf16.msra.mxu0 0
    %314 = vmatprep.subr.bf16.mxu0 0
    %315 = vmatpush1.bf16.msra.mxu0 0
    %316 = vmatprep.subr.bf16.mxu0 0
    %317 = vmatpush1.bf16.msra.mxu0 0
    %318 = vmatprep.subr.bf16.mxu0 0
    %319 = vmatpush1.bf16.msra.mxu0 0
    %320 = vmatprep.subr.bf16.mxu0 0
    %321 = vmatpush1.bf16.msra.mxu0 0
    %322 = vmatprep.subr.bf16.mxu0 0
    %323 = vmatpush1.bf16.msra.mxu0 0
    %324 = vmatprep.subr.bf16.mxu0 0
    %325 = vmatpush1.bf16.msra.mxu0 0
    %326 = vmatprep.mubr.bf16.mxu0 0
    %327 = vmatmul.mubr.bf16.gmra.mrb[0].mxu0 %v185
    %v328 = vpop.f32.mrb[0].mxu0
    %v329 = vadd.f32 %v207, %v328
    %v330 = vpop.f32.mrb[0].mxu0
    %v331 = vadd.f32 %v211, %v330
    %v332 = vpop.f32.mrb[0].mxu0
    %v333 = vpop.f32.mrb[0].mxu0
    %334 = vdwg.mxu0
    %vm335 = vcmp.gt.f32.partialorder %v329, 0.0
    %vm336 = vcmp.gt.f32.partialorder %v331, 0.0
    %v337 = vmul.f32 %v329, 0.1
    %v338 = vmul.f32 %v331, 0.1
    %v339 = vsel %vm335, %v329, %v337
    %v340 = vsel %vm336, %v331, %v338
    %v341 = vpack.c.bf16 %v339, %v339
    %v342 = vpack.c.bf16 %v340, %v340
    %v343 = vld [vmem:[#allocation7] sm:$0xff]
    %v344 = vld [vmem:[#allocation7 + $0x8] sm:$0xff]
    %v345 = vld [vmem:[#allocation7 + $0x10] sm:$0xff]
    %v346 = vld [vmem:[#allocation7 + $0x18] sm:$0xf]
    %v347 = vld [vmem:[#allocation7 + $0x1c] sm:$0xff]
    %v348 = vld [vmem:[#allocation7 + $0x24] sm:$0xff]
    %v349 = vld [vmem:[#allocation7 + $0x2c] sm:$0xff]
    %v350 = vld [vmem:[#allocation7 + $0x34] sm:$0xf]
    %v351 = vld [vmem:[#allocation7 + $0x38] sm:$0xff]
    %v352 = vld [vmem:[#allocation7 + $0x40] sm:$0xff]
    %v353 = vld [vmem:[#allocation7 + $0x48] sm:$0xff]
    %v354 = vld [vmem:[#allocation7 + $0x50] sm:$0xf]
    %v355 = vld [vmem:[#allocation7 + $0x54] sm:$0xff]
    %v356 = vld [vmem:[#allocation7 + $0x5c] sm:$0xff]
    %v357 = vld [vmem:[#allocation7 + $0x64] sm:$0xff]
    %v358 = vld [vmem:[#allocation7 + $0x6c] sm:$0xf]
    %v359 = vld [vmem:[#allocation7 + $0x70] sm:$0xff]
    %v360 = vld [vmem:[#allocation7 + $0x78] sm:$0xff]
    %v361 = vld [vmem:[#allocation7 + $0x80] sm:$0xff]
    %v362 = vld [vmem:[#allocation7 + $0x88] sm:$0xf]
    %v363 = vld [vmem:[#allocation7 + $0x8c] sm:$0xff]
    %v364 = vld [vmem:[#allocation7 + $0x94] sm:$0xff]
    %v365 = vld [vmem:[#allocation7 + $0x9c] sm:$0xff]
    %v366 = vld [vmem:[#allocation7 + $0xa4] sm:$0xf]
    %v367 = vld [vmem:[#allocation7 + $0xa8] sm:$0xff]
    %v368 = vld [vmem:[#allocation7 + $0xb0] sm:$0xff]
    %v369 = vld [vmem:[#allocation7 + $0xb8] sm:$0xff]
    %v370 = vld [vmem:[#allocation7 + $0xc0] sm:$0xf]
    %v371 = vld [vmem:[#allocation7 + $0xc4] sm:$0xff]
    %v372 = vld [vmem:[#allocation7 + $0xcc] sm:$0xff]
    %v373 = vld [vmem:[#allocation7 + $0xd4] sm:$0xff]
    %v374 = vld [vmem:[#allocation7 + $0xdc] sm:$0xf]
    %v375 = vld [vmem:[#allocation7 + $0xe0] sm:$0xff]
    %v376 = vld [vmem:[#allocation7 + $0xe8] sm:$0xff]
    %v377 = vld [vmem:[#allocation7 + $0xf0] sm:$0xff]
    %v378 = vld [vmem:[#allocation7 + $0xf8] sm:$0xf]
    %v379 = vld [vmem:[#allocation7 + $0xfc] sm:$0xff]
    %v380 = vld [vmem:[#allocation7 + $0x104] sm:$0xff]
    %v381 = vld [vmem:[#allocation7 + $0x10c] sm:$0xff]
    %v382 = vld [vmem:[#allocation7 + $0x114] sm:$0xf]
    %v383 = vld [vmem:[#allocation7 + $0x118] sm:$0xff]
    %v384 = vld [vmem:[#allocation7 + $0x120] sm:$0xff]
    %v385 = vld [vmem:[#allocation7 + $0x128] sm:$0xff]
    %v386 = vld [vmem:[#allocation7 + $0x130] sm:$0xf]
    %v387 = vld [vmem:[#allocation7 + $0x134] sm:$0xff]
    %v388 = vld [vmem:[#allocation7 + $0x13c] sm:$0xff]
    %v389 = vld [vmem:[#allocation7 + $0x144] sm:$0xff]
    %v390 = vld [vmem:[#allocation7 + $0x14c] sm:$0xf]
    %v391 = vld [vmem:[#allocation7 + $0x150] sm:$0xff]
    %v392 = vld [vmem:[#allocation7 + $0x158] sm:$0xff]
    %v393 = vld [vmem:[#allocation7 + $0x160] sm:$0xff]
    %v394 = vld [vmem:[#allocation7 + $0x168] sm:$0xf]
    %v395 = vld [vmem:[#allocation7 + $0x16c] sm:$0xff]
    %v396 = vld [vmem:[#allocation7 + $0x174] sm:$0xff]
    %v397 = vld [vmem:[#allocation7 + $0x17c] sm:$0xff]
    %v398 = vld [vmem:[#allocation7 + $0x184] sm:$0xf]
    %v399 = vld [vmem:[#allocation7 + $0x188] sm:$0xff]
    %v400 = vld [vmem:[#allocation7 + $0x190] sm:$0xff]
    %v401 = vld [vmem:[#allocation7 + $0x198] sm:$0xff]
    %v402 = vld [vmem:[#allocation7 + $0x1a0] sm:$0xf]
    %v403 = vld [vmem:[#allocation7 + $0x1a4] sm:$0xff]
    %v404 = vld [vmem:[#allocation7 + $0x1ac] sm:$0xff]
    %v405 = vld [vmem:[#allocation7 + $0x1b4] sm:$0xff]
    %v406 = vld [vmem:[#allocation7 + $0x1bc] sm:$0xf]
    %v407 = vld [vmem:[#allocation7 + $0x1c0] sm:$0xff]
    %v408 = vld [vmem:[#allocation7 + $0x1c8] sm:$0xff]
    %v409 = vld [vmem:[#allocation7 + $0x1d0] sm:$0xff]
    %v410 = vld [vmem:[#allocation7 + $0x1d8] sm:$0xf]
    %v411 = vld [vmem:[#allocation7 + $0x1dc] sm:$0xff]
    %v412 = vld [vmem:[#allocation7 + $0x1e4] sm:$0xff]
    %v413 = vld [vmem:[#allocation7 + $0x1ec] sm:$0xff]
    %v414 = vld [vmem:[#allocation7 + $0x1f4] sm:$0xf]
    %v415 = vld [vmem:[#allocation7 + $0x1f8] sm:$0xff]
    %v416 = vld [vmem:[#allocation7 + $0x200] sm:$0xff]
    %v417 = vld [vmem:[#allocation7 + $0x208] sm:$0xff]
    %v418 = vld [vmem:[#allocation7 + $0x210] sm:$0xf]
    %v419 = vld [vmem:[#allocation7 + $0x214] sm:$0xff]
    %v420 = vld [vmem:[#allocation7 + $0x21c] sm:$0xff]
    %v421 = vld [vmem:[#allocation7 + $0x224] sm:$0xff]
    %v422 = vld [vmem:[#allocation7 + $0x22c] sm:$0xf]
    %v423 = vld [vmem:[#allocation7 + $0x230] sm:$0xff]
    %v424 = vld [vmem:[#allocation7 + $0x238] sm:$0xff]
    %v425 = vld [vmem:[#allocation7 + $0x240] sm:$0xff]
    %v426 = vld [vmem:[#allocation7 + $0x248] sm:$0xf]
    %v427 = vld [vmem:[#allocation7 + $0x24c] sm:$0xff]
    %v428 = vld [vmem:[#allocation7 + $0x254] sm:$0xff]
    %v429 = vld [vmem:[#allocation7 + $0x25c] sm:$0xff]
    %v430 = vld [vmem:[#allocation7 + $0x264] sm:$0xf]
    %v431 = vld [vmem:[#allocation7 + $0x268] sm:$0xff]
    %v432 = vld [vmem:[#allocation7 + $0x270] sm:$0xff]
    %v433 = vld [vmem:[#allocation7 + $0x278] sm:$0xff]
    %v434 = vld [vmem:[#allocation7 + $0x280] sm:$0xf]
    %v435 = vld [vmem:[#allocation7 + $0x284] sm:$0xff]
    %v436 = vld [vmem:[#allocation7 + $0x28c] sm:$0xff]
    %v437 = vld [vmem:[#allocation7 + $0x294] sm:$0xff]
    %v438 = vld [vmem:[#allocation7 + $0x29c] sm:$0xf]
    %v439 = vld [vmem:[#allocation7 + $0x2a0] sm:$0xff]
    %v440 = vld [vmem:[#allocation7 + $0x2a8] sm:$0xff]
    %v441 = vld [vmem:[#allocation7 + $0x2b0] sm:$0xff]
    %v442 = vld [vmem:[#allocation7 + $0x2b8] sm:$0xf]
    %v443 = vld [vmem:[#allocation7 + $0x2bc] sm:$0xff]
    %v444 = vld [vmem:[#allocation7 + $0x2c4] sm:$0xff]
    %v445 = vld [vmem:[#allocation7 + $0x2cc] sm:$0xff]
    %v446 = vld [vmem:[#allocation7 + $0x2d4] sm:$0xf]
    %v447 = vld [vmem:[#allocation7 + $0x2d8] sm:$0xff]
    %v448 = vld [vmem:[#allocation7 + $0x2e0] sm:$0xff]
    %v449 = vld [vmem:[#allocation7 + $0x2e8] sm:$0xff]
    %v450 = vld [vmem:[#allocation7 + $0x2f0] sm:$0xf]
    %v451 = vld [vmem:[#allocation7 + $0x2f4] sm:$0xff]
    %v452 = vld [vmem:[#allocation7 + $0x2fc] sm:$0xff]
    %v453 = vld [vmem:[#allocation7 + $0x304] sm:$0xff]
    %v454 = vld [vmem:[#allocation7 + $0x30c] sm:$0xf]
    %v455 = vld [vmem:[#allocation7 + $0x310] sm:$0xff]
    %v456 = vld [vmem:[#allocation7 + $0x318] sm:$0xff]
    %v457 = vld [vmem:[#allocation7 + $0x320] sm:$0xff]
    %v458 = vld [vmem:[#allocation7 + $0x328] sm:$0xf]
    %v459 = vld [vmem:[#allocation7 + $0x32c] sm:$0xff]
    %v460 = vld [vmem:[#allocation7 + $0x334] sm:$0xff]
    %v461 = vld [vmem:[#allocation7 + $0x33c] sm:$0xff]
    %v462 = vld [vmem:[#allocation7 + $0x344] sm:$0xf]
    %v463 = vld [vmem:[#allocation7 + $0x348] sm:$0xff]
    %v464 = vld [vmem:[#allocation7 + $0x350] sm:$0xff]
    %v465 = vld [vmem:[#allocation7 + $0x358] sm:$0xff]
    %v466 = vld [vmem:[#allocation7 + $0x360] sm:$0xf]
    %v467 = vld [vmem:[#allocation7 + $0x364] sm:$0xff]
    %v468 = vld [vmem:[#allocation7 + $0x36c] sm:$0xff]
    %v469 = vld [vmem:[#allocation7 + $0x374] sm:$0xff]
    %v470 = vld [vmem:[#allocation7 + $0x37c] sm:$0xf]
    %v471 = vld [vmem:[%s6] sm:$0xff]
    %v473 = vlaneseq
    %v474 = vshrl.u32 %v473, 7
    %v475 = vsub.s32 0, %v474
    %v476 = vrot.slane %v471, %v475
    %v477 = vlaneseq
    %v478 = vshrl.u32 %v477, 7
    %v479 = vsub.s32 1, %v478
    %v480 = vrot.slane %v471, %v479
    %v481 = vlaneseq
    %v482 = vshrl.u32 %v481, 7
    %v483 = vsub.s32 2, %v482
    %v484 = vrot.slane %v471, %v483
    %v485 = vlaneseq
    %v486 = vshrl.u32 %v485, 7
    %v487 = vsub.s32 3, %v486
    %v488 = vrot.slane %v471, %v487
    %v489 = vlaneseq
    %v490 = vshrl.u32 %v489, 7
    %v491 = vsub.s32 4, %v490
    %v492 = vrot.slane %v471, %v491
    %v493 = vlaneseq
    %v494 = vshrl.u32 %v493, 7
    %v495 = vsub.s32 5, %v494
    %v496 = vrot.slane %v471, %v495
    %v497 = vlaneseq
    %v498 = vshrl.u32 %v497, 7
    %v499 = vsub.s32 6, %v498
    %v500 = vrot.slane %v471, %v499
    %v636 = vunpack.c.l.b16 %v343
    %v637 = vunpack.c.h.b16 %v343
    %v638 = vunpack.c.l.b16 %v344
    %v639 = vunpack.c.h.b16 %v344
    %v640 = vunpack.c.l.b16 %v345
    %v641 = vunpack.c.h.b16 %v345
    %v642 = vunpack.c.l.b16 %v346
    %v643 = vunpack.c.l.b16 %v347
    %v644 = vunpack.c.h.b16 %v347
    %v645 = vunpack.c.l.b16 %v348
    %v646 = vunpack.c.h.b16 %v348
    %v647 = vunpack.c.l.b16 %v349
    %v648 = vunpack.c.h.b16 %v349
    %v649 = vunpack.c.l.b16 %v350
    %v650 = vunpack.c.l.b16 %v351
    %v651 = vunpack.c.h.b16 %v351
    %v652 = vunpack.c.l.b16 %v352
    %v653 = vunpack.c.h.b16 %v352
    %v654 = vunpack.c.l.b16 %v353
    %v655 = vunpack.c.h.b16 %v353
    %v656 = vunpack.c.l.b16 %v354
    %v657 = vunpack.c.l.b16 %v355
    %v658 = vunpack.c.h.b16 %v355
    %v659 = vunpack.c.l.b16 %v356
    %v660 = vunpack.c.h.b16 %v356
    %v661 = vunpack.c.l.b16 %v357
    %v662 = vunpack.c.h.b16 %v357
    %v663 = vunpack.c.l.b16 %v358
    %v664 = vunpack.c.l.b16 %v359
    %v665 = vunpack.c.h.b16 %v359
    %v666 = vunpack.c.l.b16 %v360
    %v667 = vunpack.c.h.b16 %v360
    %v668 = vunpack.c.l.b16 %v361
    %v669 = vunpack.c.h.b16 %v361
    %v670 = vunpack.c.l.b16 %v362
    %v671 = vunpack.c.l.b16 %v363
    %v672 = vunpack.c.h.b16 %v363
    %v673 = vunpack.c.l.b16 %v364
    %v674 = vunpack.c.h.b16 %v364
    %v675 = vunpack.c.l.b16 %v365
    %v676 = vunpack.c.h.b16 %v365
    %v677 = vunpack.c.l.b16 %v366
    %v678 = vunpack.c.l.b16 %v367
    %v679 = vunpack.c.h.b16 %v367
    %v680 = vunpack.c.l.b16 %v368
    %v681 = vunpack.c.h.b16 %v368
    %v682 = vunpack.c.l.b16 %v369
    %v683 = vunpack.c.h.b16 %v369
    %v684 = vunpack.c.l.b16 %v370
    %v685 = vunpack.c.l.b16 %v371
    %v686 = vunpack.c.h.b16 %v371
    %v687 = vunpack.c.l.b16 %v372
    %v688 = vunpack.c.h.b16 %v372
    %v689 = vunpack.c.l.b16 %v373
    %v690 = vunpack.c.h.b16 %v373
    %v691 = vunpack.c.l.b16 %v374
    %v692 = vunpack.c.l.b16 %v375
    %v693 = vunpack.c.h.b16 %v375
    %v694 = vunpack.c.l.b16 %v376
    %v695 = vunpack.c.h.b16 %v376
    %v696 = vunpack.c.l.b16 %v377
    %v697 = vunpack.c.h.b16 %v377
    %v698 = vunpack.c.l.b16 %v378
    %v699 = vunpack.c.l.b16 %v379
    %v700 = vunpack.c.h.b16 %v379
    %v701 = vunpack.c.l.b16 %v380
    %v702 = vunpack.c.h.b16 %v380
    %v703 = vunpack.c.l.b16 %v381
    %v704 = vunpack.c.h.b16 %v381
    %v705 = vunpack.c.l.b16 %v382
    %v706 = vunpack.c.l.b16 %v383
    %v707 = vunpack.c.h.b16 %v383
    %v708 = vunpack.c.l.b16 %v384
    %v709 = vunpack.c.h.b16 %v384
    %v710 = vunpack.c.l.b16 %v385
    %v711 = vunpack.c.h.b16 %v385
    %v712 = vunpack.c.l.b16 %v386
    %v713 = vunpack.c.l.b16 %v387
    %v714 = vunpack.c.h.b16 %v387
    %v715 = vunpack.c.l.b16 %v388
    %v716 = vunpack.c.h.b16 %v388
    %v717 = vunpack.c.l.b16 %v389
    %v718 = vunpack.c.h.b16 %v389
    %v719 = vunpack.c.l.b16 %v390
    %v720 = vunpack.c.l.b16 %v391
    %v721 = vunpack.c.h.b16 %v391
    %v722 = vunpack.c.l.b16 %v392
    %v723 = vunpack.c.h.b16 %v392
    %v724 = vunpack.c.l.b16 %v393
    %v725 = vunpack.c.h.b16 %v393
    %v726 = vunpack.c.l.b16 %v394
    %v727 = vunpack.c.l.b16 %v395
    %v728 = vunpack.c.h.b16 %v395
    %v729 = vunpack.c.l.b16 %v396
    %v730 = vunpack.c.h.b16 %v396
    %v731 = vunpack.c.l.b16 %v397
    %v732 = vunpack.c.h.b16 %v397
    %v733 = vunpack.c.l.b16 %v398
    %v734 = vunpack.c.l.b16 %v399
    %v735 = vunpack.c.h.b16 %v399
    %v736 = vunpack.c.l.b16 %v400
    %v737 = vunpack.c.h.b16 %v400
    %v738 = vunpack.c.l.b16 %v401
    %v739 = vunpack.c.h.b16 %v401
    %v740 = vunpack.c.l.b16 %v402
    %v741 = vunpack.c.l.b16 %v403
    %v742 = vunpack.c.h.b16 %v403
    %v743 = vunpack.c.l.b16 %v404
    %v744 = vunpack.c.h.b16 %v404
    %v745 = vunpack.c.l.b16 %v405
    %v746 = vunpack.c.h.b16 %v405
    %v747 = vunpack.c.l.b16 %v406
    %v748 = vunpack.c.l.b16 %v407
    %v749 = vunpack.c.h.b16 %v407
    %v750 = vunpack.c.l.b16 %v408
    %v751 = vunpack.c.h.b16 %v408
    %v752 = vunpack.c.l.b16 %v409
    %v753 = vunpack.c.h.b16 %v409
    %v754 = vunpack.c.l.b16 %v410
    %v755 = vunpack.c.l.b16 %v411
    %v756 = vunpack.c.h.b16 %v411
    %v757 = vunpack.c.l.b16 %v412
    %v758 = vunpack.c.h.b16 %v412
    %v759 = vunpack.c.l.b16 %v413
    %v760 = vunpack.c.h.b16 %v413
    %v761 = vunpack.c.l.b16 %v414
    %v762 = vunpack.c.l.b16 %v415
    %v763 = vunpack.c.h.b16 %v415
    %v764 = vunpack.c.l.b16 %v416
    %v765 = vunpack.c.h.b16 %v416
    %v766 = vunpack.c.l.b16 %v417
    %v767 = vunpack.c.h.b16 %v417
    %v768 = vunpack.c.l.b16 %v418
    %v769 = vunpack.c.l.b16 %v419
    %v770 = vunpack.c.h.b16 %v419
    %v771 = vunpack.c.l.b16 %v420
    %v772 = vunpack.c.h.b16 %v420
    %v773 = vunpack.c.l.b16 %v421
    %v774 = vunpack.c.h.b16 %v421
    %v775 = vunpack.c.l.b16 %v422
    %v776 = vunpack.c.l.b16 %v423
    %v777 = vunpack.c.h.b16 %v423
    %v778 = vunpack.c.l.b16 %v424
    %v779 = vunpack.c.h.b16 %v424
    %v780 = vunpack.c.l.b16 %v425
    %v781 = vunpack.c.h.b16 %v425
    %v782 = vunpack.c.l.b16 %v426
    %v783 = vunpack.c.l.b16 %v427
    %v784 = vunpack.c.h.b16 %v427
    %v785 = vunpack.c.l.b16 %v428
    %v786 = vunpack.c.h.b16 %v428
    %v787 = vunpack.c.l.b16 %v429
    %v788 = vunpack.c.h.b16 %v429
    %v789 = vunpack.c.l.b16 %v430
    %v790 = vunpack.c.l.b16 %v431
    %v791 = vunpack.c.h.b16 %v431
    %v792 = vunpack.c.l.b16 %v432
    %v793 = vunpack.c.h.b16 %v432
    %v794 = vunpack.c.l.b16 %v433
    %v795 = vunpack.c.h.b16 %v433
    %v796 = vunpack.c.l.b16 %v434
    %v797 = vunpack.c.l.b16 %v435
    %v798 = vunpack.c.h.b16 %v435
    %v799 = vunpack.c.l.b16 %v436
    %v800 = vunpack.c.h.b16 %v436
    %v801 = vunpack.c.l.b16 %v437
    %v802 = vunpack.c.h.b16 %v437
    %v803 = vunpack.c.l.b16 %v438
    %v804 = vunpack.c.l.b16 %v439
    %v805 = vunpack.c.h.b16 %v439
    %v806 = vunpack.c.l.b16 %v440
    %v807 = vunpack.c.h.b16 %v440
    %v808 = vunpack.c.l.b16 %v441
    %v809 = vunpack.c.h.b16 %v441
    %v810 = vunpack.c.l.b16 %v442
    %v811 = vunpack.c.l.b16 %v443
    %v812 = vunpack.c.h.b16 %v443
    %v813 = vunpack.c.l.b16 %v444
    %v814 = vunpack.c.h.b16 %v444
    %v815 = vunpack.c.l.b16 %v445
    %v816 = vunpack.c.h.b16 %v445
    %v817 = vunpack.c.l.b16 %v446
    %v818 = vunpack.c.l.b16 %v447
    %v819 = vunpack.c.h.b16 %v447
    %v820 = vunpack.c.l.b16 %v448
    %v821 = vunpack.c.h.b16 %v448
    %v822 = vunpack.c.l.b16 %v449
    %v823 = vunpack.c.h.b16 %v449
    %v824 = vunpack.c.l.b16 %v450
    %v825 = vunpack.c.l.b16 %v451
    %v826 = vunpack.c.h.b16 %v451
    %v827 = vunpack.c.l.b16 %v452
    %v828 = vunpack.c.h.b16 %v452
    %v829 = vunpack.c.l.b16 %v453
    %v830 = vunpack.c.h.b16 %v453
    %v831 = vunpack.c.l.b16 %v454
    %v832 = vunpack.c.l.b16 %v455
    %v833 = vunpack.c.h.b16 %v455
    %v834 = vunpack.c.l.b16 %v456
    %v835 = vunpack.c.h.b16 %v456
    %v836 = vunpack.c.l.b16 %v457
    %v837 = vunpack.c.h.b16 %v457
    %v838 = vunpack.c.l.b16 %v458
    %v839 = vunpack.c.l.b16 %v459
    %v840 = vunpack.c.h.b16 %v459
    %v841 = vunpack.c.l.b16 %v460
    %v842 = vunpack.c.h.b16 %v460
    %v843 = vunpack.c.l.b16 %v461
    %v844 = vunpack.c.h.b16 %v461
    %v845 = vunpack.c.l.b16 %v462
    %v846 = vunpack.c.l.b16 %v463
    %v847 = vunpack.c.h.b16 %v463
    %v848 = vunpack.c.l.b16 %v464
    %v849 = vunpack.c.h.b16 %v464
    %v850 = vunpack.c.l.b16 %v465
    %v851 = vunpack.c.h.b16 %v465
    %v852 = vunpack.c.l.b16 %v466
    %v853 = vunpack.c.l.b16 %v467
    %v854 = vunpack.c.h.b16 %v467
    %v855 = vunpack.c.l.b16 %v468
    %v856 = vunpack.c.h.b16 %v468
    %v857 = vunpack.c.l.b16 %v469
    %v858 = vunpack.c.h.b16 %v469
    %v859 = vunpack.c.l.b16 %v470
    %v860 = vpack.c.b16 %v643, %v636
    %v861 = vpack.c.b16 %v644, %v637
    %v862 = vpack.c.b16 %v645, %v638
    %v863 = vpack.c.b16 %v646, %v639
    %v864 = vpack.c.b16 %v647, %v640
    %v865 = vpack.c.b16 %v648, %v641
    %v866 = vpack.c.b16 %v649, %v642
    %v867 = vpack.c.b16 %v657, %v650
    %v868 = vpack.c.b16 %v658, %v651
    %v869 = vpack.c.b16 %v659, %v652
    %v870 = vpack.c.b16 %v660, %v653
    %v871 = vpack.c.b16 %v661, %v654
    %v872 = vpack.c.b16 %v662, %v655
    %v873 = vpack.c.b16 %v663, %v656
    %v874 = vpack.c.b16 %v671, %v664
    %v875 = vpack.c.b16 %v672, %v665
    %v876 = vpack.c.b16 %v673, %v666
    %v877 = vpack.c.b16 %v674, %v667
    %v878 = vpack.c.b16 %v675, %v668
    %v879 = vpack.c.b16 %v676, %v669
    %v880 = vpack.c.b16 %v677, %v670
    %v881 = vpack.c.b16 %v685, %v678
    %v882 = vpack.c.b16 %v686, %v679
    %v883 = vpack.c.b16 %v687, %v680
    %v884 = vpack.c.b16 %v688, %v681
    %v885 = vpack.c.b16 %v689, %v682
    %v886 = vpack.c.b16 %v690, %v683
    %v887 = vpack.c.b16 %v691, %v684
    %v888 = vpack.c.b16 %v699, %v692
    %v889 = vpack.c.b16 %v700, %v693
    %v890 = vpack.c.b16 %v701, %v694
    %v891 = vpack.c.b16 %v702, %v695
    %v892 = vpack.c.b16 %v703, %v696
    %v893 = vpack.c.b16 %v704, %v697
    %v894 = vpack.c.b16 %v705, %v698
    %v895 = vpack.c.b16 %v713, %v706
    %v896 = vpack.c.b16 %v714, %v707
    %v897 = vpack.c.b16 %v715, %v708
    %v898 = vpack.c.b16 %v716, %v709
    %v899 = vpack.c.b16 %v717, %v710
    %v900 = vpack.c.b16 %v718, %v711
    %v901 = vpack.c.b16 %v719, %v712
    %v902 = vpack.c.b16 %v727, %v720
    %v903 = vpack.c.b16 %v728, %v721
    %v904 = vpack.c.b16 %v729, %v722
    %v905 = vpack.c.b16 %v730, %v723
    %v906 = vpack.c.b16 %v731, %v724
    %v907 = vpack.c.b16 %v732, %v725
    %v908 = vpack.c.b16 %v733, %v726
    %v909 = vpack.c.b16 %v741, %v734
    %v910 = vpack.c.b16 %v742, %v735
    %v911 = vpack.c.b16 %v743, %v736
    %v912 = vpack.c.b16 %v744, %v737
    %v913 = vpack.c.b16 %v745, %v738
    %v914 = vpack.c.b16 %v746, %v739
    %v915 = vpack.c.b16 %v747, %v740
    %v916 = vpack.c.b16 %v755, %v748
    %v917 = vpack.c.b16 %v756, %v749
    %v918 = vpack.c.b16 %v757, %v750
    %v919 = vpack.c.b16 %v758, %v751
    %v920 = vpack.c.b16 %v759, %v752
    %v921 = vpack.c.b16 %v760, %v753
    %v922 = vpack.c.b16 %v761, %v754
    %v923 = vpack.c.b16 %v769, %v762
    %v924 = vpack.c.b16 %v770, %v763
    %v925 = vpack.c.b16 %v771, %v764
    %v926 = vpack.c.b16 %v772, %v765
    %v927 = vpack.c.b16 %v773, %v766
    %v928 = vpack.c.b16 %v774, %v767
    %v929 = vpack.c.b16 %v775, %v768
    %v930 = vpack.c.b16 %v783, %v776
    %v931 = vpack.c.b16 %v784, %v777
    %v932 = vpack.c.b16 %v785, %v778
    %v933 = vpack.c.b16 %v786, %v779
    %v934 = vpack.c.b16 %v787, %v780
    %v935 = vpack.c.b16 %v788, %v781
    %v936 = vpack.c.b16 %v789, %v782
    %v937 = vpack.c.b16 %v797, %v790
    %v938 = vpack.c.b16 %v798, %v791
    %v939 = vpack.c.b16 %v799, %v792
    %v940 = vpack.c.b16 %v800, %v793
    %v941 = vpack.c.b16 %v801, %v794
    %v942 = vpack.c.b16 %v802, %v795
    %v943 = vpack.c.b16 %v803, %v796
    %v944 = vpack.c.b16 %v811, %v804
    %v945 = vpack.c.b16 %v812, %v805
    %v946 = vpack.c.b16 %v813, %v806
    %v947 = vpack.c.b16 %v814, %v807
    %v948 = vpack.c.b16 %v815, %v808
    %v949 = vpack.c.b16 %v816, %v809
    %v950 = vpack.c.b16 %v817, %v810
    %v951 = vpack.c.b16 %v825, %v818
    %v952 = vpack.c.b16 %v826, %v819
    %v953 = vpack.c.b16 %v827, %v820
    %v954 = vpack.c.b16 %v828, %v821
    %v955 = vpack.c.b16 %v829, %v822
    %v956 = vpack.c.b16 %v830, %v823
    %v957 = vpack.c.b16 %v831, %v824
    %v958 = vpack.c.b16 %v839, %v832
    %v959 = vpack.c.b16 %v840, %v833
    %v960 = vpack.c.b16 %v841, %v834
    %v961 = vpack.c.b16 %v842, %v835
    %v962 = vpack.c.b16 %v843, %v836
    %v963 = vpack.c.b16 %v844, %v837
    %v964 = vpack.c.b16 %v845, %v838
    %v965 = vpack.c.b16 %v853, %v846
    %v966 = vpack.c.b16 %v854, %v847
    %v967 = vpack.c.b16 %v855, %v848
    %v968 = vpack.c.b16 %v856, %v849
    %v969 = vpack.c.b16 %v857, %v850
    %v970 = vpack.c.b16 %v858, %v851
    %v971 = vpack.c.b16 %v859, %v852
    %1084 = vmatprep.subr.bf16.mxu0 %v861
    %1085 = vmatpush1.bf16.msra.mxu0 %v860
    %1086 = vmatprep.subr.bf16.mxu0 %v868
    %1087 = vmatpush1.bf16.msra.mxu0 %v867
    %1088 = vmatprep.subr.bf16.mxu0 %v875
    %1089 = vmatpush1.bf16.msra.mxu0 %v874
    %1090 = vmatprep.subr.bf16.mxu0 %v882
    %1091 = vmatpush1.bf16.msra.mxu0 %v881
    %1092 = vmatprep.subr.bf16.mxu0 %v889
    %1093 = vmatpush1.bf16.msra.mxu0 %v888
    %1094 = vmatprep.subr.bf16.mxu0 %v896
    %1095 = vmatpush1.bf16.msra.mxu0 %v895
    %1096 = vmatprep.subr.bf16.mxu0 %v903
    %1097 = vmatpush1.bf16.msra.mxu0 %v902
    %1098 = vmatprep.subr.bf16.mxu0 %v910
    %1099 = vmatpush1.bf16.msra.mxu0 %v909
    %1100 = vmatprep.subr.bf16.mxu0 %v917
    %1101 = vmatpush1.bf16.msra.mxu0 %v916
    %1102 = vmatprep.subr.bf16.mxu0 %v924
    %1103 = vmatpush1.bf16.msra.mxu0 %v923
    %1104 = vmatprep.subr.bf16.mxu0 %v931
    %1105 = vmatpush1.bf16.msra.mxu0 %v930
    %1106 = vmatprep.subr.bf16.mxu0 %v938
    %1107 = vmatpush1.bf16.msra.mxu0 %v937
    %1108 = vmatprep.subr.bf16.mxu0 %v945
    %1109 = vmatpush1.bf16.msra.mxu0 %v944
    %1110 = vmatprep.subr.bf16.mxu0 %v952
    %1111 = vmatpush1.bf16.msra.mxu0 %v951
    %1112 = vmatprep.subr.bf16.mxu0 %v959
    %1113 = vmatpush1.bf16.msra.mxu0 %v958
    %1114 = vmatprep.subr.bf16.mxu0 %v966
    %1115 = vmatpush1.bf16.msra.mxu0 %v965
    %1116 = vmatprep.mubr.bf16.mxu0 %v342
    %1117 = vmatmul.mubr.bf16.gmra.mrb[0].mxu0 %v341
    %v1118 = vpop.f32.mrb[0].mxu0
    %v1119 = vadd.f32 %v476, %v1118
    %v1120 = vpop.f32.mrb[0].mxu0
    %v1121 = vadd.f32 %v480, %v1120
    %v1122 = vpop.f32.mrb[0].mxu0
    %v1123 = vpop.f32.mrb[0].mxu0
    %1124 = vdwg.mxu0
    %1125 = vmatprep.subr.bf16.mxu0 %v863
    %1126 = vmatpush1.bf16.msra.mxu0 %v862
    %1127 = vmatprep.subr.bf16.mxu0 %v870
    %1128 = vmatpush1.bf16.msra.mxu0 %v869
    %1129 = vmatprep.subr.bf16.mxu0 %v877
    %1130 = vmatpush1.bf16.msra.mxu0 %v876
    %1131 = vmatprep.subr.bf16.mxu0 %v884
    %1132 = vmatpush1.bf16.msra.mxu0 %v883
    %1133 = vmatprep.subr.bf16.mxu0 %v891
    %1134 = vmatpush1.bf16.msra.mxu0 %v890
    %1135 = vmatprep.subr.bf16.mxu0 %v898
    %1136 = vmatpush1.bf16.msra.mxu0 %v897
    %1137 = vmatprep.subr.bf16.mxu0 %v905
    %1138 = vmatpush1.bf16.msra.mxu0 %v904
    %1139 = vmatprep.subr.bf16.mxu0 %v912
    %1140 = vmatpush1.bf16.msra.mxu0 %v911
    %1141 = vmatprep.subr.bf16.mxu0 %v919
    %1142 = vmatpush1.bf16.msra.mxu0 %v918
    %1143 = vmatprep.subr.bf16.mxu0 %v926
    %1144 = vmatpush1.bf16.msra.mxu0 %v925
    %1145 = vmatprep.subr.bf16.mxu0 %v933
    %1146 = vmatpush1.bf16.msra.mxu0 %v932
    %1147 = vmatprep.subr.bf16.mxu0 %v940
    %1148 = vmatpush1.bf16.msra.mxu0 %v939
    %1149 = vmatprep.subr.bf16.mxu0 %v947
    %1150 = vmatpush1.bf16.msra.mxu0 %v946
    %1151 = vmatprep.subr.bf16.mxu0 %v954
    %1152 = vmatpush1.bf16.msra.mxu0 %v953
    %1153 = vmatprep.subr.bf16.mxu0 %v961
    %1154 = vmatpush1.bf16.msra.mxu0 %v960
    %1155 = vmatprep.subr.bf16.mxu0 %v968
    %1156 = vmatpush1.bf16.msra.mxu0 %v967
    %1157 = vmatprep.mubr.bf16.mxu0 %v342
    %1158 = vmatmul.mubr.bf16.gmra.mrb[0].mxu0 %v341
    %v1159 = vpop.f32.mrb[0].mxu0
    %v1160 = vadd.f32 %v484, %v1159
    %v1161 = vpop.f32.mrb[0].mxu0
    %v1162 = vadd.f32 %v488, %v1161
    %v1163 = vpop.f32.mrb[0].mxu0
    %v1164 = vpop.f32.mrb[0].mxu0
    %1165 = vdwg.mxu0
    %1166 = vmatprep.subr.bf16.mxu0 %v865
    %1167 = vmatpush1.bf16.msra.mxu0 %v864
    %1168 = vmatprep.subr.bf16.mxu0 %v872
    %1169 = vmatpush1.bf16.msra.mxu0 %v871
    %1170 = vmatprep.subr.bf16.mxu0 %v879
    %1171 = vmatpush1.bf16.msra.mxu0 %v878
    %1172 = vmatprep.subr.bf16.mxu0 %v886
    %1173 = vmatpush1.bf16.msra.mxu0 %v885
    %1174 = vmatprep.subr.bf16.mxu0 %v893
    %1175 = vmatpush1.bf16.msra.mxu0 %v892
    %1176 = vmatprep.subr.bf16.mxu0 %v900
    %1177 = vmatpush1.bf16.msra.mxu0 %v899
    %1178 = vmatprep.subr.bf16.mxu0 %v907
    %1179 = vmatpush1.bf16.msra.mxu0 %v906
    %1180 = vmatprep.subr.bf16.mxu0 %v914
    %1181 = vmatpush1.bf16.msra.mxu0 %v913
    %1182 = vmatprep.subr.bf16.mxu0 %v921
    %1183 = vmatpush1.bf16.msra.mxu0 %v920
    %1184 = vmatprep.subr.bf16.mxu0 %v928
    %1185 = vmatpush1.bf16.msra.mxu0 %v927
    %1186 = vmatprep.subr.bf16.mxu0 %v935
    %1187 = vmatpush1.bf16.msra.mxu0 %v934
    %1188 = vmatprep.subr.bf16.mxu0 %v942
    %1189 = vmatpush1.bf16.msra.mxu0 %v941
    %1190 = vmatprep.subr.bf16.mxu0 %v949
    %1191 = vmatpush1.bf16.msra.mxu0 %v948
    %1192 = vmatprep.subr.bf16.mxu0 %v956
    %1193 = vmatpush1.bf16.msra.mxu0 %v955
    %1194 = vmatprep.subr.bf16.mxu0 %v963
    %1195 = vmatpush1.bf16.msra.mxu0 %v962
    %1196 = vmatprep.subr.bf16.mxu0 %v970
    %1197 = vmatpush1.bf16.msra.mxu0 %v969
    %1198 = vmatprep.mubr.bf16.mxu0 %v342
    %1199 = vmatmul.mubr.bf16.gmra.mrb[0].mxu0 %v341
    %v1200 = vpop.f32.mrb[0].mxu0
    %v1201 = vadd.f32 %v492, %v1200
    %v1202 = vpop.f32.mrb[0].mxu0
    %v1203 = vadd.f32 %v496, %v1202
    %v1204 = vpop.f32.mrb[0].mxu0
    %v1205 = vpop.f32.mrb[0].mxu0
    %1206 = vdwg.mxu0
    %1207 = vmatprep.subr.bf16.mxu0 0
    %1208 = vmatpush1.bf16.msra.mxu0 %v866
    %1209 = vmatprep.subr.bf16.mxu0 0
    %1210 = vmatpush1.bf16.msra.mxu0 %v873
    %1211 = vmatprep.subr.bf16.mxu0 0
    %1212 = vmatpush1.bf16.msra.mxu0 %v880
    %1213 = vmatprep.subr.bf16.mxu0 0
    %1214 = vmatpush1.bf16.msra.mxu0 %v887
    %1215 = vmatprep.subr.bf16.mxu0 0
    %1216 = vmatpush1.bf16.msra.mxu0 %v894
    %1217 = vmatprep.subr.bf16.mxu0 0
    %1218 = vmatpush1.bf16.msra.mxu0 %v901
    %1219 = vmatprep.subr.bf16.mxu0 0
    %1220 = vmatpush1.bf16.msra.mxu0 %v908
    %1221 = vmatprep.subr.bf16.mxu0 0
    %1222 = vmatpush1.bf16.msra.mxu0 %v915
    %1223 = vmatprep.subr.bf16.mxu0 0
    %1224 = vmatpush1.bf16.msra.mxu0 %v922
    %1225 = vmatprep.subr.bf16.mxu0 0
    %1226 = vmatpush1.bf16.msra.mxu0 %v929
    %1227 = vmatprep.subr.bf16.mxu0 0
    %1228 = vmatpush1.bf16.msra.mxu0 %v936
    %1229 = vmatprep.subr.bf16.mxu0 0
    %1230 = vmatpush1.bf16.msra.mxu0 %v943
    %1231 = vmatprep.subr.bf16.mxu0 0
    %1232 = vmatpush1.bf16.msra.mxu0 %v950
    %1233 = vmatprep.subr.bf16.mxu0 0
    %1234 = vmatpush1.bf16.msra.mxu0 %v957
    %1235 = vmatprep.subr.bf16.mxu0 0
    %1236 = vmatpush1.bf16.msra.mxu0 %v964
    %1237 = vmatprep.subr.bf16.mxu0 0
    %1238 = vmatpush1.bf16.msra.mxu0 %v971
    %1239 = vmatprep.mubr.bf16.mxu0 %v342
    %1240 = vmatmul.mubr.bf16.gmra.mrb[0].mxu0 %v341
    %v1241 = vpop.f32.mrb[0].mxu0
    %v1242 = vadd.f32 %v500, %v1241
    %v1243 = vpop.f32.mrb[0].mxu0
    %v1244 = vpop.f32.mrb[0].mxu0
    %v1245 = vpop.f32.mrb[0].mxu0
    %1246 = vdwg.mxu0
    %v1247 = vtanh.pop %v1119
    %v1248 = vtanh.pop %v1121
    %v1249 = vtanh.pop %v1160
    %v1250 = vtanh.pop %v1162
    %v1251 = vtanh.pop %v1201
    %v1252 = vtanh.pop %v1203
    %v1253 = vtanh.pop %v1242
    %1254 = vst [vmem:[#allocation8] sm:$0xff] %v1247
    %1255 = vst [vmem:[#allocation8 + $0x8] sm:$0xff] %v1248
    %1256 = vst [vmem:[#allocation8 + $0x10] sm:$0xff] %v1249
    %1257 = vst [vmem:[#allocation8 + $0x18] sm:$0xff] %v1250
    %1258 = vst [vmem:[#allocation8 + $0x20] sm:$0xff] %v1251
    %1259 = vst [vmem:[#allocation8 + $0x28] sm:$0xff] %v1252
    %1260 = vst [vmem:[#allocation8 + $0x30] sm:$0xff] %v1253
    // Predicated region
    $region42: #{generator_forward.1} parent=1 // pred_check
      _
    $region43: #{generator_forward.1} parent=1 // pred_check_branch
      %1262 = sbr.rel (0) target = $region45
    $region44: #{generator_forward.1} parent=1 // pred_region
      %s1264 = ssub.s32 896, 896
      %1265 = vsyncadd [#allocation4], %s1264
      %s1267 = sshll.u32 [#allocation8], 4
      %s1268 = int_to_ptr.vmem [resolvable:$true] %s1267
      %1270 = dma.vmem_to_hbm [thread:$0]  %s1268, 896, %s7, [#allocation4]
    $region45: #{generator_forward.1} parent=1 // pred_fallthru
      _
    // Predicated region
    $region46: #{generator_forward.1} parent=1 // pred_check
      _
    $region47: #{generator_forward.1} parent=1 // pred_check_branch
      %1272 = sbr.rel (0) target = $region49
    $region48: #{generator_forward.1} parent=1 // pred_region
      %1273 = dma.done [#allocation4], 896
    $region49: #{generator_forward.1} parent=1 // pred_fallthru
      _
    %1274 = vsyncpa [#allocation3], 1
    %1275 = vsyncpa [#allocation6], 1
    %1276 = vsyncpa [#allocation4], 1

</llo_original>
